<compile_context>
chip_gen: v7x
topology: tpu7x:2x2x1
jax: 0.10.0
libtpu: 0.0.40
codegen_flags: <defaults>
</compile_context>

<pallas_src>
import math
import jax
import jax.numpy as jnp
from jax.experimental import pallas as pl
from jax.experimental.pallas import tpu as pltpu


def _round_up(n, m):
    return ((n + m - 1) // m) * m


# ----------------------------------------------------------------------------
# Kernel: grid = (batch_tiles, k_tiles).  fc1 is K-accumulated into VMEM
# scratch; fc2 / BN-folded fc5 / sigmoid run once on the last K step.
# ----------------------------------------------------------------------------
def mlp2_kernel(x_ref, w1_ref, b1_ref, w2_ref, b2_ref, w5_ref, b5_ref,
                o_ref, h1_acc):
    k = pl.program_id(1)

    @pl.when(k == 0)
    def _():
        h1_acc[...] = jnp.zeros_like(h1_acc)

    # fc1 partial product over this vocab slice (bf16 operands, f32 MXU acc).
    h1_acc[...] += jnp.dot(x_ref[...], w1_ref[...],
                           preferred_element_type=jnp.float32)

    @pl.when(k == pl.num_programs(1) - 1)
    def _():
        # fc1 bias + ReLU   (dropout1 == identity at inference)
        h1 = jnp.maximum(h1_acc[...] + b1_ref[...], 0.0)

        # fc2 + ReLU        (dropout2 == identity at inference)
        h2 = jnp.dot(h1.astype(jnp.bfloat16), w2_ref[...],
                     preferred_element_type=jnp.float32) + b2_ref[...]
        h2 = jnp.maximum(h2, 0.0)

        # BatchNorm1d (eval) is folded into w5/b5 in the wrapper.
        logits = jnp.dot(h2.astype(jnp.bfloat16), w5_ref[...],
                         preferred_element_type=jnp.float32) + b5_ref[...]

        # sigmoid via EUP exp + approx reciprocal (keeps the VALU slot free).
        sig = pl.reciprocal(1.0 + jnp.exp(-logits), approx=True)
        o_ref[...] = sig.astype(o_ref.dtype)


# ----------------------------------------------------------------------------
# Parameter preparation: BN folding (f32) + lane padding + bf16 cast (once)
# ----------------------------------------------------------------------------
def fold_and_pad_params(params, vocab_size, hidden_dim, num_classes, *, tk=512):
    h2 = hidden_dim // 2
    Vp = _round_up(vocab_size, 128)
    tk_eff = min(_round_up(tk, 128), Vp)
    Vp = _round_up(Vp, tk_eff)              # K panels divide padded vocab evenly
    Hp = _round_up(hidden_dim, 128)
    H2p = _round_up(h2, 128)
    Cp = _round_up(num_classes, 128)

    # Fold BatchNorm1d (eval mode, running stats) into fc5 (all in f32):
    #   y = ((h - mean) * gamma / sqrt(var+eps) + beta) @ w5 + b5
    #     = h @ (scale[:,None] * w5) + (shift @ w5 + b5)
    eps = 1e-5
    scale = params["gamma"] * jax.lax.rsqrt(params["var"] + eps)    # [h2]
    shift = params["beta"] - params["mean"] * scale                 # [h2]
    w5f = params["w5"] * scale[:, None]                             # [h2, C]
    b5f = shift @ params["w5"] + params["b5"]                       # [C]

    def pad2(a, r, c):
        return jnp.pad(a, ((0, r - a.shape[0]), (0, c - a.shape[1])))

    def pad_bias(b, c):
        return jnp.pad(b, (0, c - b.shape[0])).reshape(1, c)

    return {
        "w1": pad2(params["w1"], Vp, Hp).astype(jnp.bfloat16),      # [Vp, Hp]
        "b1": pad_bias(params["b1"], Hp).astype(jnp.float32),       # [1, Hp]
        "w2": pad2(params["w2"], Hp, H2p).astype(jnp.bfloat16),     # [Hp, H2p]
        "b2": pad_bias(params["b2"], H2p).astype(jnp.float32),      # [1, H2p]
        "w5": pad2(w5f, H2p, Cp).astype(jnp.bfloat16),              # [H2p, Cp]
        "b5": pad_bias(b5f, Cp).astype(jnp.float32),                # [1, Cp]
        "dims": (vocab_size, hidden_dim, num_classes, Vp, Hp, H2p, Cp, tk_eff),
    }


# ----------------------------------------------------------------------------
# Forward wrapper: batch-parallel x K-arbitrary grid, single-buffered residents
# ----------------------------------------------------------------------------
def mlp2_forward(x, prep, *, tb=512):
    V, _, C, Vp, Hp, H2p, Cp, tk = prep["dims"]
    B = x.shape[0]

    # Batch tile: 256-multiples keep the 256-wide MXU (v6e/v7x) fully fed and
    # amortize per-step overhead; small batches round up to bf16's 16-row pack.
    if B >= 256:
        tb_eff = min(_round_up(tb, 256), _round_up(B, 256))
    else:
        tb_eff = _round_up(B, 16)
    Bp = _round_up(B, tb_eff)
    n_k = Vp // tk
    grid = (Bp // tb_eff, n_k)

    xp = jnp.pad(x, ((0, Bp - B), (0, Vp - V))).astype(jnp.bfloat16)

    def resident(shape):
        # Constant index_map + single buffer -> DMA'd once, stays VMEM-resident
        # at 1x (not 2x) its size across the whole grid.
        return pl.BlockSpec(shape, lambda i, k: (0, 0),
                            pipeline_mode=pl.Buffered(1))

    in_specs = [
        pl.BlockSpec((tb_eff, tk), lambda i, k: (i, k)),   # x: streamed
        pl.BlockSpec((tk, Hp), lambda i, k: (k, 0)),       # w1: streamed over K
        resident((1, Hp)),                                 # b1
        resident((Hp, H2p)), resident((1, H2p)),           # w2, b2
        resident((H2p, Cp)), resident((1, Cp)),            # w5(folded), b5(folded)
    ]
    out_specs = pl.BlockSpec((tb_eff, Cp), lambda i, k: (i, 0))

    # VMEM budget: single-buffered residents + double-buffered streamed tiles
    # (x, w1 panel, bf16 out tile) + f32 fc1 accumulator + intermediates.
    resident_bytes = (Hp * H2p + H2p * Cp) * 2 + (Hp + H2p + Cp) * 4
    stream_bytes = 2 * (tk * Hp * 2 + tb_eff * tk * 2 + tb_eff * Cp * 2)
    scratch_bytes = tb_eff * Hp * 4
    act_bytes = tb_eff * (Hp + H2p + Cp) * 4
    needed = resident_bytes + stream_bytes + scratch_bytes + act_bytes

    # Clamp against the chip's actual VMEM (64 MiB/TC v7x, 128 MiB v5e/v6e),
    # leaving ~13% headroom for Mosaic internal scratch / semaphores.
    try:
        phys_vmem = int(pltpu.get_tpu_info().vmem_capacity_bytes)
    except Exception:
        phys_vmem = 64 * 2**20            # conservative (v7x-sized) fallback
    vmem_cap = int(0.87 * phys_vmem)
    vmem_limit = int(min(max(32 * 2**20, 1.3 * needed), vmem_cap))

    out_padded = pl.pallas_call(
        mlp2_kernel,
        out_shape=jax.ShapeDtypeStruct((Bp, Cp), jnp.bfloat16),
        grid=grid,
        in_specs=in_specs,
        out_specs=out_specs,
        scratch_shapes=[pltpu.VMEM((tb_eff, Hp), jnp.float32)],   # fc1 acc
        compiler_params=pltpu.CompilerParams(
            # TODO(synk): switch the batch axis to pltpu.CORE_PARALLEL (or use
            # pl.core_map) when building specifically for v7x's 2 TCs/chip.
            dimension_semantics=("parallel", "arbitrary"),
            vmem_limit_bytes=vmem_limit),
    )(xp, prep["w1"], prep["b1"], prep["w2"], prep["b2"],
      prep["w5"], prep["b5"])

    # Slice padding off; HBM writeback stays bf16, user-facing dtype is f32
    # to match the PyTorch module.
    return out_padded[:B, :C].astype(jnp.float32)


# ----------------------------------------------------------------------------
# Init (matches the module: kaiming_uniform_(a=0) weights, zero biases) + ref
# ----------------------------------------------------------------------------
def kaiming_uniform_t(key, out_features, in_features):
    # torch.nn.init.kaiming_uniform_ defaults: bound = sqrt(6 / fan_in)
    bound = math.sqrt(6.0 / in_features)
    w = jax.random.uniform(key, (out_features, in_features),
                           dtype=jnp.float32, minval=-bound, maxval=bound)
    return w.T  # stored as [in, out] for the kernel


def init_params(key, vocab_size, hidden_dim, num_classes):
    h2 = hidden_dim // 2
    k1, k2, k3 = jax.random.split(key, 3)
    return {
        "w1": kaiming_uniform_t(k1, hidden_dim, vocab_size),   # [V, H]
        "b1": jnp.zeros((hidden_dim,), jnp.float32),
        "w2": kaiming_uniform_t(k2, h2, hidden_dim),            # [H, H/2]
        "b2": jnp.zeros((h2,), jnp.float32),
        "gamma": jnp.ones((h2,), jnp.float32),                  # BN weight
        "beta": jnp.zeros((h2,), jnp.float32),                  # BN bias
        "mean": jnp.zeros((h2,), jnp.float32),                  # running_mean
        "var": jnp.ones((h2,), jnp.float32),                    # running_var
        "w5": kaiming_uniform_t(k3, num_classes, h2),           # [H/2, C]
        "b5": jnp.zeros((num_classes,), jnp.float32),
    }


def reference_forward(x, p):
    h1 = jnp.maximum(x @ p["w1"] + p["b1"], 0.0)
    h2 = jnp.maximum(h1 @ p["w2"] + p["b2"], 0.0)
    h2 = (h2 - p["mean"]) * jax.lax.rsqrt(p["var"] + 1e-5) * p["gamma"] + p["beta"]
    return jax.nn.sigmoid(h2 @ p["w5"] + p["b5"])


if __name__ == "__main__":
    vocab_size, hidden_dim, num_classes = 32, 32, 4
    batch = 8

    key = jax.random.PRNGKey(0)
    kx, kp = jax.random.split(key)
    x = jax.random.normal(kx, (batch, vocab_size), dtype=jnp.float32)
    params = init_params(kp, vocab_size, hidden_dim, num_classes)
    prep = fold_and_pad_params(params, vocab_size, hidden_dim, num_classes)

    out = mlp2_forward(x, prep)
    jax.block_until_ready(out)

    ref = reference_forward(x, params)
    assert out.shape == (batch, num_classes)
    assert bool(jnp.all((out >= 0.0) & (out <= 1.0)))
    max_err = float(jnp.max(jnp.abs(out - ref)))
    assert max_err < 2e-2, f"max abs err {max_err}"
    print("KERNEL_OK")
</pallas_src>

<mosaic_0001>
module attributes {stable_mosaic.version = 11 : i64} {
  func.func @mlp2_kernel(%arg0: i32, %arg1: i32, %arg2: memref<16x128xbf16, #tpu.memory_space<vmem>>, %arg3: memref<128x128xbf16, #tpu.memory_space<vmem>>, %arg4: memref<1x128xf32, #tpu.memory_space<vmem>>, %arg5: memref<128x128xbf16, #tpu.memory_space<vmem>>, %arg6: memref<1x128xf32, #tpu.memory_space<vmem>>, %arg7: memref<128x128xbf16, #tpu.memory_space<vmem>>, %arg8: memref<1x128xf32, #tpu.memory_space<vmem>>, %arg9: memref<16x128xbf16, #tpu.memory_space<vmem>>, %arg10: memref<16x128xf32, #tpu.memory_space<vmem>>) attributes {dimension_semantics = [#tpu.dimension_semantics<parallel>, #tpu.dimension_semantics<arbitrary>], iteration_bounds = array<i64: 1, 1>, scalar_prefetch = 0 : i64, scratch_operands = 1 : i64, tpu.core_type = #tpu.core_type<tc>, window_params = [{transform_indices = @transform_0, window_bounds = array<i64: 16, 128>}, {transform_indices = @transform_1, window_bounds = array<i64: 128, 128>}, {pipeline_mode = #tpu.pipeline_mode<synchronous>, transform_indices = @transform_2, window_bounds = array<i64: 1, 128>}, {pipeline_mode = #tpu.pipeline_mode<synchronous>, transform_indices = @transform_3, window_bounds = array<i64: 128, 128>}, {pipeline_mode = #tpu.pipeline_mode<synchronous>, transform_indices = @transform_4, window_bounds = array<i64: 1, 128>}, {pipeline_mode = #tpu.pipeline_mode<synchronous>, transform_indices = @transform_5, window_bounds = array<i64: 128, 128>}, {pipeline_mode = #tpu.pipeline_mode<synchronous>, transform_indices = @transform_6, window_bounds = array<i64: 1, 128>}, {transform_indices = @transform_7, window_bounds = array<i64: 16, 128>}]} {
    %c0_i32 = arith.constant 0 : i32
    %0 = arith.cmpi eq, %arg1, %c0_i32 : i32
    %1 = arith.extui %0 : i1 to i32
    %c0_i32_0 = arith.constant 0 : i32
    %2 = arith.cmpi ne, %1, %c0_i32_0 : i32
    scf.if %2 {
      %cst_10 = arith.constant 0.000000e+00 : f32
      %12 = vector.broadcast %cst_10 : f32 to vector<16x128xf32>
      %c0_11 = arith.constant 0 : index
      %c0_12 = arith.constant 0 : index
      %13 = vector.load %arg10[%c0_11, %c0_12] : memref<16x128xf32, #tpu.memory_space<vmem>>, vector<16x128xf32>
      tpu.vector_store %arg10[%c0_11, %c0_12], %12 {strides = array<i32>} : memref<16x128xf32, #tpu.memory_space<vmem>>, vector<16x128xf32>,
    } else {
    }
    %c0 = arith.constant 0 : index
    %c0_1 = arith.constant 0 : index
    %3 = vector.load %arg10[%c0, %c0_1] : memref<16x128xf32, #tpu.memory_space<vmem>>, vector<16x128xf32>
    %c0_2 = arith.constant 0 : index
    %c0_3 = arith.constant 0 : index
    %4 = vector.load %arg2[%c0_2, %c0_3] : memref<16x128xbf16, #tpu.memory_space<vmem>>, vector<16x128xbf16>
    %c0_4 = arith.constant 0 : index
    %c0_5 = arith.constant 0 : index
    %5 = vector.load %arg3[%c0_4, %c0_5] : memref<128x128xbf16, #tpu.memory_space<vmem>>, vector<128x128xbf16>
    %cst = arith.constant dense<0.000000e+00> : vector<16x128xf32>
    %6 = tpu.matmul %4, %5, %cst {dimension_numbers = #tpu.dot_dimension_numbers<[1], [0], [0], [1], [0, 0, 1, 1], [], []>} : vector<16x128xbf16>, vector<128x128xbf16>, vector<16x128xf32> -> vector<16x128xf32>
    %7 = arith.addf %3, %6 : vector<16x128xf32>
    %c0_6 = arith.constant 0 : index
    %c0_7 = arith.constant 0 : index
    %8 = vector.load %arg10[%c0_6, %c0_7] : memref<16x128xf32, #tpu.memory_space<vmem>>, vector<16x128xf32>
    tpu.vector_store %arg10[%c0_6, %c0_7], %7 {strides = array<i32>} : memref<16x128xf32, #tpu.memory_space<vmem>>, vector<16x128xf32>,
    %c0_i32_8 = arith.constant 0 : i32
    %9 = arith.cmpi eq, %arg1, %c0_i32_8 : i32
    %10 = arith.extui %9 : i1 to i32
    %c0_i32_9 = arith.constant 0 : i32
    %11 = arith.cmpi ne, %10, %c0_i32_9 : i32
    scf.if %11 {
      %c0_10 = arith.constant 0 : index
      %c0_11 = arith.constant 0 : index
      %12 = vector.load %arg10[%c0_10, %c0_11] : memref<16x128xf32, #tpu.memory_space<vmem>>, vector<16x128xf32>
      %c0_12 = arith.constant 0 : index
      %c0_13 = arith.constant 0 : index
      %13 = vector.load %arg4[%c0_12, %c0_13] : memref<1x128xf32, #tpu.memory_space<vmem>>, vector<1x128xf32>
      %14 = vector.broadcast %13 : vector<1x128xf32> to vector<16x128xf32>
      %15 = arith.addf %12, %14 : vector<16x128xf32>
      %cst_14 = arith.constant 0.000000e+00 : f32
      %16 = vector.broadcast %cst_14 : f32 to vector<16x128xf32>
      %17 = arith.maximumf %15, %16 : vector<16x128xf32>
      %18 = arith.truncf %17 : vector<16x128xf32> to vector<16x128xbf16>
      %c0_15 = arith.constant 0 : index
      %c0_16 = arith.constant 0 : index
      %19 = vector.load %arg5[%c0_15, %c0_16] : memref<128x128xbf16, #tpu.memory_space<vmem>>, vector<128x128xbf16>
      %cst_17 = arith.constant dense<0.000000e+00> : vector<16x128xf32>
      %20 = tpu.matmul %18, %19, %cst_17 {dimension_numbers = #tpu.dot_dimension_numbers<[1], [0], [0], [1], [0, 0, 1, 1], [], []>} : vector<16x128xbf16>, vector<128x128xbf16>, vector<16x128xf32> -> vector<16x128xf32>
      %c0_18 = arith.constant 0 : index
      %c0_19 = arith.constant 0 : index
      %21 = vector.load %arg6[%c0_18, %c0_19] : memref<1x128xf32, #tpu.memory_space<vmem>>, vector<1x128xf32>
      %22 = vector.broadcast %21 : vector<1x128xf32> to vector<16x128xf32>
      %23 = arith.addf %20, %22 : vector<16x128xf32>
      %cst_20 = arith.constant 0.000000e+00 : f32
      %24 = vector.broadcast %cst_20 : f32 to vector<16x128xf32>
      %25 = arith.maximumf %23, %24 : vector<16x128xf32>
      %26 = arith.truncf %25 : vector<16x128xf32> to vector<16x128xbf16>
      %c0_21 = arith.constant 0 : index
      %c0_22 = arith.constant 0 : index
      %27 = vector.load %arg7[%c0_21, %c0_22] : memref<128x128xbf16, #tpu.memory_space<vmem>>, vector<128x128xbf16>
      %cst_23 = arith.constant dense<0.000000e+00> : vector<16x128xf32>
      %28 = tpu.matmul %26, %27, %cst_23 {dimension_numbers = #tpu.dot_dimension_numbers<[1], [0], [0], [1], [0, 0, 1, 1], [], []>} : vector<16x128xbf16>, vector<128x128xbf16>, vector<16x128xf32> -> vector<16x128xf32>
      %c0_24 = arith.constant 0 : index
      %c0_25 = arith.constant 0 : index
      %29 = vector.load %arg8[%c0_24, %c0_25] : memref<1x128xf32, #tpu.memory_space<vmem>>, vector<1x128xf32>
      %30 = vector.broadcast %29 : vector<1x128xf32> to vector<16x128xf32>
      %31 = arith.addf %28, %30 : vector<16x128xf32>
      %cst_26 = arith.constant 0.000000e+00 : f32
      %32 = vector.broadcast %cst_26 : f32 to vector<16x128xf32>
      %33 = arith.subf %32, %31 : vector<16x128xf32>
      %34 = math.exp %33 : vector<16x128xf32>
      %cst_27 = arith.constant 1.000000e+00 : f32
      %35 = vector.broadcast %cst_27 : f32 to vector<16x128xf32>
      %36 = arith.addf %35, %34 : vector<16x128xf32>
      %37 = tpu.reciprocal %36 {approx = true} : vector<16x128xf32> -> vector<16x128xf32>
      %38 = arith.truncf %37 : vector<16x128xf32> to vector<16x128xbf16>
      %c0_28 = arith.constant 0 : index
      %c0_29 = arith.constant 0 : index
      %39 = vector.load %arg9[%c0_28, %c0_29] : memref<16x128xbf16, #tpu.memory_space<vmem>>, vector<16x128xbf16>
      tpu.vector_store %arg9[%c0_28, %c0_29], %38 {strides = array<i32>} : memref<16x128xbf16, #tpu.memory_space<vmem>>, vector<16x128xbf16>,
    } else {
    }
    return
  }
  func.func @transform_0(%arg0: i32, %arg1: i32) -> (i32, i32) {
    %c0_i32 = arith.constant 0 : i32
    return %arg0, %arg1 : i32, i32
  }
  func.func @transform_1(%arg0: i32, %arg1: i32) -> (i32, i32) {
    %c0_i32 = arith.constant 0 : i32
    %c0_i32_0 = arith.constant 0 : i32
    return %arg1, %c0_i32 : i32, i32
  }
  func.func @transform_2(%arg0: i32, %arg1: i32) -> (i32, i32) {
    %c0_i32 = arith.constant 0 : i32
    %c0_i32_0 = arith.constant 0 : i32
    %c0_i32_1 = arith.constant 0 : i32
    return %c0_i32, %c0_i32_0 : i32, i32
  }
  func.func @transform_3(%arg0: i32, %arg1: i32) -> (i32, i32) {
    %c0_i32 = arith.constant 0 : i32
    %c0_i32_0 = arith.constant 0 : i32
    %c0_i32_1 = arith.constant 0 : i32
    return %c0_i32, %c0_i32_0 : i32, i32
  }
  func.func @transform_4(%arg0: i32, %arg1: i32) -> (i32, i32) {
    %c0_i32 = arith.constant 0 : i32
    %c0_i32_0 = arith.constant 0 : i32
    %c0_i32_1 = arith.constant 0 : i32
    return %c0_i32, %c0_i32_0 : i32, i32
  }
  func.func @transform_5(%arg0: i32, %arg1: i32) -> (i32, i32) {
    %c0_i32 = arith.constant 0 : i32
    %c0_i32_0 = arith.constant 0 : i32
    %c0_i32_1 = arith.constant 0 : i32
    return %c0_i32, %c0_i32_0 : i32, i32
  }
  func.func @transform_6(%arg0: i32, %arg1: i32) -> (i32, i32) {
    %c0_i32 = arith.constant 0 : i32
    %c0_i32_0 = arith.constant 0 : i32
    %c0_i32_1 = arith.constant 0 : i32
    return %c0_i32, %c0_i32_0 : i32, i32
  }
  func.func @transform_7(%arg0: i32, %arg1: i32) -> (i32, i32) {
    %c0_i32 = arith.constant 0 : i32
    %c0_i32_0 = arith.constant 0 : i32
    return %arg0, %c0_i32 : i32, i32
  }
}

</mosaic_0001>

<llo_original>
// kernel: tpu_custom_call.1
$region0: #{tpu_custom_call.1}
  #allocation0 [shape = 'u32[]', space=smem, size = 0x4, offset = 0x4, fixed_abs, tag = 'smem constant byte address 0x4 - core index']
  #allocation1 [shape = 'u32[144,128]{1,0:T(1,128)}', space=vmem, size = 0x12000, scoped, tag = 'internal scratch']
  #allocation2 [shape = 'f32[16,128]{1,0:T(8,128)}', space=vmem, size = 0x2000, scoped, tag = 'scratch operand']
  %s0 = inlined_call_operand.hbm [shape: bf16[16,128], index: 0, kind: input, shape index: {}]
  %s1 = inlined_call_operand.hbm [shape: bf16[128,128], index: 1, kind: input, shape index: {}]
  %s2 = inlined_call_operand.vmem [shape: f32[1,128], index: 2, kind: input, shape index: {}]
  %s3 = inlined_call_operand.hbm [shape: bf16[128,128], index: 3, kind: input, shape index: {}]
  %s4 = inlined_call_operand.vmem [shape: f32[1,128], index: 4, kind: input, shape index: {}]
  %s5 = inlined_call_operand.hbm [shape: bf16[128,128], index: 5, kind: input, shape index: {}]
  %s6 = inlined_call_operand.vmem [shape: f32[1,128], index: 6, kind: input, shape index: {}]
  %s7 = inlined_call_operand.hbm [shape: bf16[16,128], index: 7, kind: output, shape index: {}]
  %s8 = sld [smem:[#allocation0]]
  $region62: #{tpu_custom_call.1} parent=0
    _
  %s10 = ssub.s32 1, %s8
  %s11 = scalar_select 0, %s10, %s8
  $region1: #{tpu_custom_call.1} parent=0
    #allocation3 [shape = 'u8[4096]{0}', space=vmem, size = 0x1000, scoped, tag = 'input window, operand 0, single buffered']
    #allocation4 [shape = 's32[1]{0}', space=sflag, size = 0x4, scoped, tag = 'scoped memory for tpu_custom_call.1']
    #allocation5 [shape = 's32[1]{0}', space=sflag, size = 0x4, scoped, tag = 'scoped memory for tpu_custom_call.1']
    #allocation6 [shape = 'u8[32768]{0}', space=vmem, size = 0x8000, scoped, tag = 'input window, operand 1, single buffered']
    #allocation7 [shape = 's32[1]{0}', space=sflag, size = 0x4, scoped, tag = 'scoped memory for tpu_custom_call.1']
    #allocation8 [shape = 'u8[32768]{0}', space=vmem, size = 0x8000, scoped, tag = 'input window, operand 3, single buffered']
    #allocation9 [shape = 'u8[32768]{0}', space=vmem, size = 0x8000, scoped, tag = 'input window, operand 5, single buffered']
    #allocation10 [shape = 's32[1]{0}', space=sflag, size = 0x4, scoped, tag = 'scoped memory for tpu_custom_call.1']
    #allocation11 [shape = 'u8[4096]{0}', space=vmem, size = 0x1000, scoped, tag = 'output window, operand 0, single buffered']
    %12 = vsyncpa [#allocation4], 0
    %13 = vsyncpa [#allocation7], 0
    %14 = vsyncpa [#allocation10], 0
    %15 = vsyncpa [#allocation5], 0
    // Predicated region
    $region2: #{tpu_custom_call.1} parent=1 // pred_check
      _
    $region3: #{tpu_custom_call.1} parent=1 // pred_check_branch
      %17 = sbr.rel (0) target = $region5
    $region4: #{tpu_custom_call.1} parent=1 // pred_region
      %s19 = ssub.s32 128, 128
      %20 = vsyncadd [#allocation4], %s19
      %s21 = sshll.u32 [#allocation3], 4
      %s22 = int_to_ptr.vmem [resolvable:$true] %s21
      %27 = dma.hbm_to_vmem [thread:$0]  %s0, 128, %s22, [#allocation4], 64, 64, 4
    $region5: #{tpu_custom_call.1} parent=1 // pred_fallthru
      _
    // Predicated region
    $region6: #{tpu_custom_call.1} parent=1 // pred_check
      _
    $region7: #{tpu_custom_call.1} parent=1 // pred_check_branch
      %29 = sbr.rel (0) target = $region9
    $region8: #{tpu_custom_call.1} parent=1 // pred_region
      %s31 = ssub.s32 1024, 1024
      %32 = vsyncadd [#allocation7], %s31
      %s33 = sshll.u32 [#allocation6], 4
      %s34 = int_to_ptr.vmem [resolvable:$true] %s33
      %39 = dma.hbm_to_vmem [thread:$0]  %s1, 1024, %s34, [#allocation7], 64, 64, 4
    $region9: #{tpu_custom_call.1} parent=1 // pred_fallthru
      _
    // Predicated region
    $region10: #{tpu_custom_call.1} parent=1 // pred_check
      _
    $region11: #{tpu_custom_call.1} parent=1 // pred_check_branch
      %41 = sbr.rel (0) target = $region13
    $region12: #{tpu_custom_call.1} parent=1 // pred_region
      _
    $region13: #{tpu_custom_call.1} parent=1 // pred_fallthru
      _
    // Predicated region
    $region14: #{tpu_custom_call.1} parent=1 // pred_check
      _
    $region15: #{tpu_custom_call.1} parent=1 // pred_check_branch
      %43 = sbr.rel (0) target = $region17
    $region16: #{tpu_custom_call.1} parent=1 // pred_region
      %s45 = ssub.s32 1024, 1024
      %46 = vsyncadd [#allocation7], %s45
      %s47 = sshll.u32 [#allocation8], 4
      %s48 = int_to_ptr.vmem [resolvable:$true] %s47
      %53 = dma.hbm_to_vmem [thread:$0]  %s3, 1024, %s48, [#allocation7], 64, 64, 4
    $region17: #{tpu_custom_call.1} parent=1 // pred_fallthru
      _
    // Predicated region
    $region18: #{tpu_custom_call.1} parent=1 // pred_check
      _
    $region19: #{tpu_custom_call.1} parent=1 // pred_check_branch
      %55 = sbr.rel (0) target = $region21
    $region20: #{tpu_custom_call.1} parent=1 // pred_region
      _
    $region21: #{tpu_custom_call.1} parent=1 // pred_fallthru
      _
    // Predicated region
    $region22: #{tpu_custom_call.1} parent=1 // pred_check
      _
    $region23: #{tpu_custom_call.1} parent=1 // pred_check_branch
      %57 = sbr.rel (0) target = $region25
    $region24: #{tpu_custom_call.1} parent=1 // pred_region
      %s59 = ssub.s32 1024, 1024
      %60 = vsyncadd [#allocation10], %s59
      %s61 = sshll.u32 [#allocation9], 4
      %s62 = int_to_ptr.vmem [resolvable:$true] %s61
      %67 = dma.hbm_to_vmem [thread:$0]  %s5, 1024, %s62, [#allocation10], 64, 64, 4
    $region25: #{tpu_custom_call.1} parent=1 // pred_fallthru
      _
    // Predicated region
    $region26: #{tpu_custom_call.1} parent=1 // pred_check
      _
    $region27: #{tpu_custom_call.1} parent=1 // pred_check_branch
      %69 = sbr.rel (0) target = $region29
    $region28: #{tpu_custom_call.1} parent=1 // pred_region
      _
    $region29: #{tpu_custom_call.1} parent=1 // pred_fallthru
      _
    // Predicated region
    $region30: #{tpu_custom_call.1} parent=1 // pred_check
      _
    $region31: #{tpu_custom_call.1} parent=1 // pred_check_branch
      %71 = sbr.rel (0) target = $region33
    $region32: #{tpu_custom_call.1} parent=1 // pred_region
      %72 = dma.done [#allocation4], 128
    $region33: #{tpu_custom_call.1} parent=1 // pred_fallthru
      _
    // Predicated region
    $region34: #{tpu_custom_call.1} parent=1 // pred_check
      _
    $region35: #{tpu_custom_call.1} parent=1 // pred_check_branch
      %74 = sbr.rel (0) target = $region37
    $region36: #{tpu_custom_call.1} parent=1 // pred_region
      %75 = dma.done [#allocation7], 1024
    $region37: #{tpu_custom_call.1} parent=1 // pred_fallthru
      _
    // Predicated region
    $region38: #{tpu_custom_call.1} parent=1 // pred_check
      _
    $region39: #{tpu_custom_call.1} parent=1 // pred_check_branch
      %77 = sbr.rel (0) target = $region41
    $region40: #{tpu_custom_call.1} parent=1 // pred_region
      %78 = dma.done [#allocation7], 1024
    $region41: #{tpu_custom_call.1} parent=1 // pred_fallthru
      _
    // Predicated region
    $region42: #{tpu_custom_call.1} parent=1 // pred_check
      _
    $region43: #{tpu_custom_call.1} parent=1 // pred_check_branch
      %80 = sbr.rel (0) target = $region45
    $region44: #{tpu_custom_call.1} parent=1 // pred_region
      %81 = dma.done [#allocation10], 1024
    $region45: #{tpu_custom_call.1} parent=1 // pred_fallthru
      _
    %p83 = scmp.eq.s32.totalorder 0, 0
    // Predicated region
    $region46: #{tpu_custom_call.1} parent=1 // pred_check
      %p84 = pneg %p83
    $region47: #{tpu_custom_call.1} parent=1 // pred_check_branch
      %86 = sbr.rel (%p84) target = $region49
    $region48: #{tpu_custom_call.1} parent=1 // pred_region
      %87 = vst [vmem:[#allocation2] sm:$0xff] 0.0
      %88 = vst [vmem:[#allocation2 + $0x8] sm:$0xff] 0.0
    $region49: #{tpu_custom_call.1} parent=1 // pred_fallthru
      _
    %v89 = vld [vmem:[#allocation2] sm:$0xff]
    %v90 = vld [vmem:[#allocation2 + $0x8] sm:$0xff]
    %v91 = vld [vmem:[#allocation3] sm:$0xf]
    %v92 = vld [vmem:[#allocation3 + $0x4] sm:$0xf]
    %v93 = vld [vmem:[#allocation6] sm:$0xf]
    %v94 = vld [vmem:[#allocation6 + $0x4] sm:$0xf]
    %v95 = vld [vmem:[#allocation6 + $0x8] sm:$0xf]
    %v96 = vld [vmem:[#allocation6 + $0xc] sm:$0xf]
    %v97 = vld [vmem:[#allocation6 + $0x10] sm:$0xf]
    %v98 = vld [vmem:[#allocation6 + $0x14] sm:$0xf]
    %v99 = vld [vmem:[#allocation6 + $0x18] sm:$0xf]
    %v100 = vld [vmem:[#allocation6 + $0x1c] sm:$0xf]
    %v101 = vld [vmem:[#allocation6 + $0x20] sm:$0xf]
    %v102 = vld [vmem:[#allocation6 + $0x24] sm:$0xf]
    %v103 = vld [vmem:[#allocation6 + $0x28] sm:$0xf]
    %v104 = vld [vmem:[#allocation6 + $0x2c] sm:$0xf]
    %v105 = vld [vmem:[#allocation6 + $0x30] sm:$0xf]
    %v106 = vld [vmem:[#allocation6 + $0x34] sm:$0xf]
    %v107 = vld [vmem:[#allocation6 + $0x38] sm:$0xf]
    %v108 = vld [vmem:[#allocation6 + $0x3c] sm:$0xf]
    %v111 = vunpack.c.l.b16 %v91
    %v112 = vunpack.c.l.b16 %v92
    %v113 = vpack.c.b16 %v112, %v111
    %v131 = vunpack.c.l.b16 %v93
    %v132 = vunpack.c.l.b16 %v94
    %v133 = vunpack.c.l.b16 %v95
    %v134 = vunpack.c.l.b16 %v96
    %v135 = vunpack.c.l.b16 %v97
    %v136 = vunpack.c.l.b16 %v98
    %v137 = vunpack.c.l.b16 %v99
    %v138 = vunpack.c.l.b16 %v100
    %v139 = vunpack.c.l.b16 %v101
    %v140 = vunpack.c.l.b16 %v102
    %v141 = vunpack.c.l.b16 %v103
    %v142 = vunpack.c.l.b16 %v104
    %v143 = vunpack.c.l.b16 %v105
    %v144 = vunpack.c.l.b16 %v106
    %v145 = vunpack.c.l.b16 %v107
    %v146 = vunpack.c.l.b16 %v108
    %v147 = vpack.c.b16 %v132, %v131
    %v148 = vpack.c.b16 %v134, %v133
    %v149 = vpack.c.b16 %v136, %v135
    %v150 = vpack.c.b16 %v138, %v137
    %v151 = vpack.c.b16 %v140, %v139
    %v152 = vpack.c.b16 %v142, %v141
    %v153 = vpack.c.b16 %v144, %v143
    %v154 = vpack.c.b16 %v146, %v145
    %163 = vmatprep.subr.bf16.mxu0 0
    %164 = vmatpush1.bf16.msra.mxu0 %v147
    %165 = vmatprep.subr.bf16.mxu0 0
    %166 = vmatpush1.bf16.msra.mxu0 %v148
    %167 = vmatprep.subr.bf16.mxu0 0
    %168 = vmatpush1.bf16.msra.mxu0 %v149
    %169 = vmatprep.subr.bf16.mxu0 0
    %170 = vmatpush1.bf16.msra.mxu0 %v150
    %171 = vmatprep.subr.bf16.mxu0 0
    %172 = vmatpush1.bf16.msra.mxu0 %v151
    %173 = vmatprep.subr.bf16.mxu0 0
    %174 = vmatpush1.bf16.msra.mxu0 %v152
    %175 = vmatprep.subr.bf16.mxu0 0
    %176 = vmatpush1.bf16.msra.mxu0 %v153
    %177 = vmatprep.subr.bf16.mxu0 0
    %178 = vmatpush1.bf16.msra.mxu0 %v154
    %179 = vmatprep.subr.bf16.mxu0 0
    %180 = vmatpush1.bf16.msra.mxu0 0
    %181 = vmatprep.subr.bf16.mxu0 0
    %182 = vmatpush1.bf16.msra.mxu0 0
    %183 = vmatprep.subr.bf16.mxu0 0
    %184 = vmatpush1.bf16.msra.mxu0 0
    %185 = vmatprep.subr.bf16.mxu0 0
    %186 = vmatpush1.bf16.msra.mxu0 0
    %187 = vmatprep.subr.bf16.mxu0 0
    %188 = vmatpush1.bf16.msra.mxu0 0
    %189 = vmatprep.subr.bf16.mxu0 0
    %190 = vmatpush1.bf16.msra.mxu0 0
    %191 = vmatprep.subr.bf16.mxu0 0
    %192 = vmatpush1.bf16.msra.mxu0 0
    %193 = vmatprep.subr.bf16.mxu0 0
    %194 = vmatpush1.bf16.msra.mxu0 0
    %195 = vmatprep.mubr.bf16.mxu0 0
    %196 = vmatmul.mubr.bf16.gmra.mrb[0].mxu0 %v113
    %v197 = vpop.f32.mrb[0].mxu0
    %v198 = vadd.f32 0.0, %v197
    %v199 = vpop.f32.mrb[0].mxu0
    %v200 = vpop.f32.mrb[0].mxu0
    %v201 = vadd.f32 0.0, %v200
    %v202 = vpop.f32.mrb[0].mxu0
    %203 = vdwg.mxu0
    %v204 = vadd.f32 %v89, %v198
    %v205 = vadd.f32 %v90, %v201
    %206 = vst [vmem:[#allocation2] sm:$0xff] %v204
    %207 = vst [vmem:[#allocation2 + $0x8] sm:$0xff] %v205
    // Predicated region
    $region50: #{tpu_custom_call.1} parent=1 // pred_check
      %p208 = pneg %p83
    $region51: #{tpu_custom_call.1} parent=1 // pred_check_branch
      %210 = sbr.rel (%p208) target = $region53
    $region52: #{tpu_custom_call.1} parent=1 // pred_region
      %v211 = vld [vmem:[#allocation2] sm:$0xff]
      %v212 = vld [vmem:[#allocation2 + $0x8] sm:$0xff]
      %v213 = vld [vmem:[%s2] sm:$0x1]
      %v215 = vlaneseq
      %v216 = vshrl.u32 %v215, 7
      %v217 = vsub.s32 0, %v216
      %v218 = vrot.slane %v213, %v217
      %v220 = vadd.f32 %v211, %v218
      %v221 = vadd.f32 %v212, %v218
      %v222 = vmax.f32 %v220, 0.0
      %v223 = vmax.f32 %v221, 0.0
      %v224 = vpack.c.bf16 %v223, %v222
      %v225 = vld [vmem:[#allocation8] sm:$0xf]
      %v226 = vld [vmem:[#allocation8 + $0x4] sm:$0xf]
      %v227 = vld [vmem:[#allocation8 + $0x8] sm:$0xf]
      %v228 = vld [vmem:[#allocation8 + $0xc] sm:$0xf]
      %v229 = vld [vmem:[#allocation8 + $0x10] sm:$0xf]
      %v230 = vld [vmem:[#allocation8 + $0x14] sm:$0xf]
      %v231 = vld [vmem:[#allocation8 + $0x18] sm:$0xf]
      %v232 = vld [vmem:[#allocation8 + $0x1c] sm:$0xf]
      %v233 = vld [vmem:[#allocation8 + $0x20] sm:$0xf]
      %v234 = vld [vmem:[#allocation8 + $0x24] sm:$0xf]
      %v235 = vld [vmem:[#allocation8 + $0x28] sm:$0xf]
      %v236 = vld [vmem:[#allocation8 + $0x2c] sm:$0xf]
      %v237 = vld [vmem:[#allocation8 + $0x30] sm:$0xf]
      %v238 = vld [vmem:[#allocation8 + $0x34] sm:$0xf]
      %v239 = vld [vmem:[#allocation8 + $0x38] sm:$0xf]
      %v240 = vld [vmem:[#allocation8 + $0x3c] sm:$0xf]
      %v241 = vld [vmem:[%s4] sm:$0x1]
      %v243 = vlaneseq
      %v244 = vshrl.u32 %v243, 7
      %v245 = vsub.s32 0, %v244
      %v246 = vrot.slane %v241, %v245
      %v264 = vunpack.c.l.b16 %v225
      %v265 = vunpack.c.l.b16 %v226
      %v266 = vunpack.c.l.b16 %v227
      %v267 = vunpack.c.l.b16 %v228
      %v268 = vunpack.c.l.b16 %v229
      %v269 = vunpack.c.l.b16 %v230
      %v270 = vunpack.c.l.b16 %v231
      %v271 = vunpack.c.l.b16 %v232
      %v272 = vunpack.c.l.b16 %v233
      %v273 = vunpack.c.l.b16 %v234
      %v274 = vunpack.c.l.b16 %v235
      %v275 = vunpack.c.l.b16 %v236
      %v276 = vunpack.c.l.b16 %v237
      %v277 = vunpack.c.l.b16 %v238
      %v278 = vunpack.c.l.b16 %v239
      %v279 = vunpack.c.l.b16 %v240
      %v280 = vpack.c.b16 %v265, %v264
      %v281 = vpack.c.b16 %v267, %v266
      %v282 = vpack.c.b16 %v269, %v268
      %v283 = vpack.c.b16 %v271, %v270
      %v284 = vpack.c.b16 %v273, %v272
      %v285 = vpack.c.b16 %v275, %v274
      %v286 = vpack.c.b16 %v277, %v276
      %v287 = vpack.c.b16 %v279, %v278
      %296 = vmatprep.subr.bf16.mxu0 0
      %297 = vmatpush1.bf16.msra.mxu0 %v280
      %298 = vmatprep.subr.bf16.mxu0 0
      %299 = vmatpush1.bf16.msra.mxu0 %v281
      %300 = vmatprep.subr.bf16.mxu0 0
      %301 = vmatpush1.bf16.msra.mxu0 %v282
      %302 = vmatprep.subr.bf16.mxu0 0
      %303 = vmatpush1.bf16.msra.mxu0 %v283
      %304 = vmatprep.subr.bf16.mxu0 0
      %305 = vmatpush1.bf16.msra.mxu0 %v284
      %306 = vmatprep.subr.bf16.mxu0 0
      %307 = vmatpush1.bf16.msra.mxu0 %v285
      %308 = vmatprep.subr.bf16.mxu0 0
      %309 = vmatpush1.bf16.msra.mxu0 %v286
      %310 = vmatprep.subr.bf16.mxu0 0
      %311 = vmatpush1.bf16.msra.mxu0 %v287
      %312 = vmatprep.subr.bf16.mxu0 0
      %313 = vmatpush1.bf16.msra.mxu0 0
      %314 = vmatprep.subr.bf16.mxu0 0
      %315 = vmatpush1.bf16.msra.mxu0 0
      %316 = vmatprep.subr.bf16.mxu0 0
      %317 = vmatpush1.bf16.msra.mxu0 0
      %318 = vmatprep.subr.bf16.mxu0 0
      %319 = vmatpush1.bf16.msra.mxu0 0
      %320 = vmatprep.subr.bf16.mxu0 0
      %321 = vmatpush1.bf16.msra.mxu0 0
      %322 = vmatprep.subr.bf16.mxu0 0
      %323 = vmatpush1.bf16.msra.mxu0 0
      %324 = vmatprep.subr.bf16.mxu0 0
      %325 = vmatpush1.bf16.msra.mxu0 0
      %326 = vmatprep.subr.bf16.mxu0 0
      %327 = vmatpush1.bf16.msra.mxu0 0
      %328 = vmatprep.mubr.bf16.mxu0 0
      %329 = vmatmul.mubr.bf16.gmra.mrb[0].mxu0 %v224
      %v330 = vpop.f32.mrb[0].mxu0
      %v331 = vadd.f32 %v246, %v330
      %v332 = vpop.f32.mrb[0].mxu0
      %v333 = vpop.f32.mrb[0].mxu0
      %v334 = vadd.f32 %v246, %v333
      %v335 = vpop.f32.mrb[0].mxu0
      %336 = vdwg.mxu0
      %v337 = vmax.f32 %v331, 0.0
      %v338 = vmax.f32 %v334, 0.0
      %v339 = vpack.c.bf16 %v338, %v337
      %v340 = vld [vmem:[#allocation9] sm:$0xf]
      %v341 = vld [vmem:[#allocation9 + $0x4] sm:$0xf]
      %v342 = vld [vmem:[#allocation9 + $0x8] sm:$0xf]
      %v343 = vld [vmem:[#allocation9 + $0xc] sm:$0xf]
      %v344 = vld [vmem:[#allocation9 + $0x10] sm:$0xf]
      %v345 = vld [vmem:[#allocation9 + $0x14] sm:$0xf]
      %v346 = vld [vmem:[#allocation9 + $0x18] sm:$0xf]
      %v347 = vld [vmem:[#allocation9 + $0x1c] sm:$0xf]
      %v348 = vld [vmem:[#allocation9 + $0x20] sm:$0xf]
      %v349 = vld [vmem:[#allocation9 + $0x24] sm:$0xf]
      %v350 = vld [vmem:[#allocation9 + $0x28] sm:$0xf]
      %v351 = vld [vmem:[#allocation9 + $0x2c] sm:$0xf]
      %v352 = vld [vmem:[#allocation9 + $0x30] sm:$0xf]
      %v353 = vld [vmem:[#allocation9 + $0x34] sm:$0xf]
      %v354 = vld [vmem:[#allocation9 + $0x38] sm:$0xf]
      %v355 = vld [vmem:[#allocation9 + $0x3c] sm:$0xf]
      %v356 = vld [vmem:[%s6] sm:$0x1]
      %v358 = vlaneseq
      %v359 = vshrl.u32 %v358, 7
      %v360 = vsub.s32 0, %v359
      %v361 = vrot.slane %v356, %v360
      %v379 = vunpack.c.l.b16 %v340
      %v380 = vunpack.c.l.b16 %v341
      %v381 = vunpack.c.l.b16 %v342
      %v382 = vunpack.c.l.b16 %v343
      %v383 = vunpack.c.l.b16 %v344
      %v384 = vunpack.c.l.b16 %v345
      %v385 = vunpack.c.l.b16 %v346
      %v386 = vunpack.c.l.b16 %v347
      %v387 = vunpack.c.l.b16 %v348
      %v388 = vunpack.c.l.b16 %v349
      %v389 = vunpack.c.l.b16 %v350
      %v390 = vunpack.c.l.b16 %v351
      %v391 = vunpack.c.l.b16 %v352
      %v392 = vunpack.c.l.b16 %v353
      %v393 = vunpack.c.l.b16 %v354
      %v394 = vunpack.c.l.b16 %v355
      %v395 = vpack.c.b16 %v380, %v379
      %v396 = vpack.c.b16 %v382, %v381
      %v397 = vpack.c.b16 %v384, %v383
      %v398 = vpack.c.b16 %v386, %v385
      %v399 = vpack.c.b16 %v388, %v387
      %v400 = vpack.c.b16 %v390, %v389
      %v401 = vpack.c.b16 %v392, %v391
      %v402 = vpack.c.b16 %v394, %v393
      %411 = vmatprep.subr.bf16.mxu0 0
      %412 = vmatpush1.bf16.msra.mxu0 %v395
      %413 = vmatprep.subr.bf16.mxu0 0
      %414 = vmatpush1.bf16.msra.mxu0 %v396
      %415 = vmatprep.subr.bf16.mxu0 0
      %416 = vmatpush1.bf16.msra.mxu0 %v397
      %417 = vmatprep.subr.bf16.mxu0 0
      %418 = vmatpush1.bf16.msra.mxu0 %v398
      %419 = vmatprep.subr.bf16.mxu0 0
      %420 = vmatpush1.bf16.msra.mxu0 %v399
      %421 = vmatprep.subr.bf16.mxu0 0
      %422 = vmatpush1.bf16.msra.mxu0 %v400
      %423 = vmatprep.subr.bf16.mxu0 0
      %424 = vmatpush1.bf16.msra.mxu0 %v401
      %425 = vmatprep.subr.bf16.mxu0 0
      %426 = vmatpush1.bf16.msra.mxu0 %v402
      %427 = vmatprep.subr.bf16.mxu0 0
      %428 = vmatpush1.bf16.msra.mxu0 0
      %429 = vmatprep.subr.bf16.mxu0 0
      %430 = vmatpush1.bf16.msra.mxu0 0
      %431 = vmatprep.subr.bf16.mxu0 0
      %432 = vmatpush1.bf16.msra.mxu0 0
      %433 = vmatprep.subr.bf16.mxu0 0
      %434 = vmatpush1.bf16.msra.mxu0 0
      %435 = vmatprep.subr.bf16.mxu0 0
      %436 = vmatpush1.bf16.msra.mxu0 0
      %437 = vmatprep.subr.bf16.mxu0 0
      %438 = vmatpush1.bf16.msra.mxu0 0
      %439 = vmatprep.subr.bf16.mxu0 0
      %440 = vmatpush1.bf16.msra.mxu0 0
      %441 = vmatprep.subr.bf16.mxu0 0
      %442 = vmatpush1.bf16.msra.mxu0 0
      %443 = vmatprep.mubr.bf16.mxu0 0
      %444 = vmatmul.mubr.bf16.gmra.mrb[0].mxu0 %v339
      %v445 = vpop.f32.mrb[0].mxu0
      %v446 = vadd.f32 %v361, %v445
      %v447 = vpop.f32.mrb[0].mxu0
      %v448 = vpop.f32.mrb[0].mxu0
      %v449 = vadd.f32 %v361, %v448
      %v450 = vpop.f32.mrb[0].mxu0
      %451 = vdwg.mxu0
      %v452 = vsub.f32 0.0, %v446
      %v453 = vsub.f32 0.0, %v449
      %v454 = vmul.f32 %v452, 1.442695
      %v455 = vpow.pop %v454
      %v456 = vmul.f32 %v453, 1.442695
      %v457 = vpow.pop %v456
      %v458 = vadd.f32 %v455, 1.0
      %v459 = vadd.f32 %v457, 1.0
      %v460 = vrcp.pop %v458
      %v461 = vrcp.pop %v459
      %v462 = vpack.c.bf16 %v461, %v460
      %v464 = vunpack.c.l.b16 %v462
      %v465 = vunpack.c.h.b16 %v462
      %v466 = vpack.c.b16 %v464, %v464
      %v467 = vpack.c.b16 %v465, %v465
      %470 = vst [vmem:[#allocation11] sm:$0xf] %v466
      %471 = vst [vmem:[#allocation11 + $0x4] sm:$0xf] %v467
    $region53: #{tpu_custom_call.1} parent=1 // pred_fallthru
      _
    // Predicated region
    $region54: #{tpu_custom_call.1} parent=1 // pred_check
      _
    $region55: #{tpu_custom_call.1} parent=1 // pred_check_branch
      %473 = sbr.rel (0) target = $region57
    $region56: #{tpu_custom_call.1} parent=1 // pred_region
      %s475 = ssub.s32 128, 128
      %476 = vsyncadd [#allocation5], %s475
      %s477 = sshll.u32 [#allocation11], 4
      %s478 = int_to_ptr.vmem [resolvable:$true] %s477
      %483 = dma.vmem_to_hbm [thread:$0]  %s478, 128, %s7, [#allocation5], 64, 64, 4
    $region57: #{tpu_custom_call.1} parent=1 // pred_fallthru
      _
    // Predicated region
    $region58: #{tpu_custom_call.1} parent=1 // pred_check
      _
    $region59: #{tpu_custom_call.1} parent=1 // pred_check_branch
      %485 = sbr.rel (0) target = $region61
    $region60: #{tpu_custom_call.1} parent=1 // pred_region
      %486 = dma.done [#allocation5], 128
    $region61: #{tpu_custom_call.1} parent=1 // pred_fallthru
      _
    %487 = vsyncpa [#allocation4], 1
    %488 = vsyncpa [#allocation7], 1
    %489 = vsyncpa [#allocation10], 1
    %490 = vsyncpa [#allocation5], 1

</llo_original>
